<compile_context>
chip_gen: v5e
topology: v5e:2x2
jax: 0.10.0
libtpu: 0.0.40
codegen_flags: <defaults>
</compile_context>

<pallas_src>
import jax
import jax.numpy as jnp
from jax import lax
from jax.experimental import pallas as pl
from jax.experimental.pallas import tpu as pltpu


def _classifier_kernel(x_ref, w_ref, b_ref, o_ref):
    # x_ref: (TB, D)   w_ref: (C_pad, D)   b_ref: (1, C_pad)   o_ref: (TB, C_pad)
    x = x_ref[...]
    w = w_ref[...]

    # NT matmul on the MXU: contract x's dim 1 against w's dim 1 -> (TB, C_pad).
    # f32 accumulation regardless of operand dtype.
    logits = lax.dot_general(
        x, w,
        dimension_numbers=(((1,), (1,)), ((), ())),
        preferred_element_type=jnp.float32,
    )
    logits = logits + b_ref[...].astype(jnp.float32)

    # Numerically-stable log_softmax over the (padded) class axis, all in f32.
    # Padded columns carry bias = -1e30 -> exp underflows to exactly 0, so the
    # max / normalizer are identical to the unpadded computation.
    m = jnp.max(logits, axis=-1, keepdims=True)                  # (TB, 1)
    z = logits - m                                               # (TB, C_pad)
    lse = jnp.log(jnp.sum(jnp.exp(z), axis=-1, keepdims=True))   # (TB, 1)
    o_ref[...] = (z - lse).astype(o_ref.dtype)


def classifier_forward(x, weight, bias, *, block_b=256):
    """x: (B, D); weight: (C, D) (PyTorch nn.Linear layout); bias: (C,)."""
    B, D = x.shape
    C = weight.shape[0]

    # ---- Pad the class axis to a lane-dense multiple of 128. ----------------
    c_pad = ((C + 127) // 128) * 128
    if c_pad != C:
        weight_p = jnp.pad(weight, ((0, c_pad - C), (0, 0)))            # zero rows
        bias_p = jnp.pad(bias, (0, c_pad - C), constant_values=-1e30)   # "-inf"
    else:
        weight_p, bias_p = weight, bias
    bias_p = bias_p.reshape(1, c_pad)

    # ---- Batch tiling: multiple of 8 sublanes, pad B if needed. -------------
    tb = max(8, min(block_b, B))
    tb = (tb // 8) * 8
    b_pad = pl.cdiv(B, tb) * tb
    x_in = jnp.pad(x, ((0, b_pad - B), (0, 0))) if b_pad != B else x
    grid = (b_pad // tb,)

    itemsize = jnp.dtype(x.dtype).itemsize
    cost = pl.CostEstimate(
        flops=2 * b_pad * D * c_pad,
        transcendentals=b_pad * c_pad,
        bytes_accessed=(b_pad * D + c_pad * D + c_pad) * itemsize
        + b_pad * c_pad * 4,
    )

    out = pl.pallas_call(
        _classifier_kernel,
        out_shape=jax.ShapeDtypeStruct((b_pad, c_pad), jnp.float32),
        grid=grid,
        in_specs=[
            pl.BlockSpec((tb, D), lambda i: (i, 0)),        # x: tiled over batch
            pl.BlockSpec((c_pad, D), lambda i: (0, 0)),     # weight: resident
            pl.BlockSpec((1, c_pad), lambda i: (0, 0)),     # bias: resident
        ],
        out_specs=pl.BlockSpec((tb, c_pad), lambda i: (i, 0)),
        compiler_params=pltpu.CompilerParams(
            dimension_semantics=("parallel",)),
        cost_estimate=cost,
    )(x_in, weight_p, bias_p)

    # Strip batch / class padding.
    return out[:B, :C]


def _reference(x, weight, bias):
    logits = x @ weight.T + bias
    return jax.nn.log_softmax(logits, axis=-1)


if __name__ == "__main__":
    # Small shapes consistent with the module; B=64 with block_b=32 gives a
    # 2-step batch grid so the pipeline structure is actually exercised.
    B, IN_DIM, NUM_CLS = 64, 32, 16

    key = jax.random.PRNGKey(0)
    kx, kw, kb = jax.random.split(key, 3)

    x = jax.random.normal(kx, (B, IN_DIM), dtype=jnp.float32)

    # Deterministic params mimicking nn.Linear's uniform(-1/sqrt(in), 1/sqrt(in)).
    bound = 1.0 / jnp.sqrt(jnp.float32(IN_DIM))
    weight = jax.random.uniform(kw, (NUM_CLS, IN_DIM), jnp.float32, -bound, bound)
    bias = jax.random.uniform(kb, (NUM_CLS,), jnp.float32, -bound, bound)

    out = classifier_forward(x, weight, bias, block_b=32)
    out = jax.block_until_ready(out)

    ref = _reference(x, weight, bias)
    assert out.shape == (B, NUM_CLS)
    assert jnp.allclose(out, ref, atol=1e-5, rtol=1e-5), "mismatch vs reference"

    print("KERNEL_OK")
</pallas_src>

<mosaic_0001>
module attributes {stable_mosaic.version = 11 : i64} {
  func.func @_classifier_kernel(%arg0: i32, %arg1: memref<32x32xf32, #tpu.memory_space<vmem>>, %arg2: memref<128x32xf32, #tpu.memory_space<vmem>>, %arg3: memref<1x128xf32, #tpu.memory_space<vmem>>, %arg4: memref<32x128xf32, #tpu.memory_space<vmem>>) attributes {dimension_semantics = [#tpu.dimension_semantics<parallel>], iteration_bounds = array<i64: 2>, scalar_prefetch = 0 : i64, scratch_operands = 0 : i64, tpu.core_type = #tpu.core_type<tc>, window_params = [{transform_indices = @transform_0, window_bounds = array<i64: 32, 32>}, {pipeline_mode = #tpu.pipeline_mode<synchronous>, transform_indices = @transform_1, window_bounds = array<i64: 128, 32>}, {pipeline_mode = #tpu.pipeline_mode<synchronous>, transform_indices = @transform_2, window_bounds = array<i64: 1, 128>}, {transform_indices = @transform_3, window_bounds = array<i64: 32, 128>}]} {
    %c0 = arith.constant 0 : index
    %c0_0 = arith.constant 0 : index
    %0 = vector.load %arg1[%c0, %c0_0] : memref<32x32xf32, #tpu.memory_space<vmem>>, vector<32x32xf32>
    %c0_1 = arith.constant 0 : index
    %c0_2 = arith.constant 0 : index
    %1 = vector.load %arg2[%c0_1, %c0_2] : memref<128x32xf32, #tpu.memory_space<vmem>>, vector<128x32xf32>
    %cst = arith.constant dense<0.000000e+00> : vector<32x128xf32>
    %2 = tpu.matmul %0, %1, %cst {dimension_numbers = #tpu.dot_dimension_numbers<[1], [1], [0], [0], [0, 0, 1, 0], [], []>} : vector<32x32xf32>, vector<128x32xf32>, vector<32x128xf32> -> vector<32x128xf32>
    %c0_3 = arith.constant 0 : index
    %c0_4 = arith.constant 0 : index
    %3 = vector.load %arg3[%c0_3, %c0_4] : memref<1x128xf32, #tpu.memory_space<vmem>>, vector<1x128xf32>
    %4 = vector.broadcast %3 : vector<1x128xf32> to vector<32x128xf32>
    %5 = arith.addf %2, %4 : vector<32x128xf32>
    %cst_5 = arith.constant dense<0xFF800000> : vector<32xf32>
    %6 = vector.multi_reduction <maximumf>, %5, %cst_5 [1] : vector<32x128xf32> to vector<32xf32>
    %7 = vector.shape_cast %6 : vector<32xf32> to vector<32x1xf32>
    %8 = vector.broadcast %7 : vector<32x1xf32> to vector<32x128xf32>
    %9 = arith.subf %5, %8 : vector<32x128xf32>
    %10 = math.exp %9 : vector<32x128xf32>
    %cst_6 = arith.constant dense<0.000000e+00> : vector<32xf32>
    %11 = vector.multi_reduction <add>, %10, %cst_6 [1] : vector<32x128xf32> to vector<32xf32>
    %12 = vector.shape_cast %11 : vector<32xf32> to vector<32x1xf32>
    %13 = math.log %12 : vector<32x1xf32>
    %14 = vector.broadcast %13 : vector<32x1xf32> to vector<32x128xf32>
    %15 = arith.subf %9, %14 : vector<32x128xf32>
    %c0_7 = arith.constant 0 : index
    %c0_8 = arith.constant 0 : index
    %16 = vector.load %arg4[%c0_7, %c0_8] : memref<32x128xf32, #tpu.memory_space<vmem>>, vector<32x128xf32>
    tpu.vector_store %arg4[%c0_7, %c0_8], %15 {strides = array<i32>} : memref<32x128xf32, #tpu.memory_space<vmem>>, vector<32x128xf32>,
    return
  }
  func.func @transform_0(%arg0: i32) -> (i32, i32) {
    %c0_i32 = arith.constant 0 : i32
    %c0_i32_0 = arith.constant 0 : i32
    return %arg0, %c0_i32 : i32, i32
  }
  func.func @transform_1(%arg0: i32) -> (i32, i32) {
    %c0_i32 = arith.constant 0 : i32
    %c0_i32_0 = arith.constant 0 : i32
    %c0_i32_1 = arith.constant 0 : i32
    return %c0_i32, %c0_i32_0 : i32, i32
  }
  func.func @transform_2(%arg0: i32) -> (i32, i32) {
    %c0_i32 = arith.constant 0 : i32
    %c0_i32_0 = arith.constant 0 : i32
    %c0_i32_1 = arith.constant 0 : i32
    return %c0_i32, %c0_i32_0 : i32, i32
  }
  func.func @transform_3(%arg0: i32) -> (i32, i32) {
    %c0_i32 = arith.constant 0 : i32
    %c0_i32_0 = arith.constant 0 : i32
    return %arg0, %c0_i32 : i32, i32
  }
}

</mosaic_0001>

<llo_original>
// kernel: tpu_custom_call.1
$region0: #{tpu_custom_call.1}
  #allocation0 [shape = 'u32[]', space=smem, size = 0x4, offset = 0x4, fixed_abs, tag = 'smem constant byte address 0x4 - core index']
  #allocation1 [shape = 'u32[72,128]{1,0:T(1,128)}', space=vmem, size = 0x9000, scoped, tag = 'internal scratch']
  %s0 = inlined_call_operand.vmem [shape: f32[64,32], index: 0, kind: input, shape index: {}]
  %s1 = inlined_call_operand.vmem [shape: f32[128,32], index: 1, kind: input, shape index: {}]
  %s2 = inlined_call_operand.vmem [shape: f32[1,128], index: 2, kind: input, shape index: {}]
  %s3 = inlined_call_operand.hbm [shape: f32[64,128], index: 3, kind: output, shape index: {}]
  %s4 = sld [smem:[#allocation0]]
  $region45: #{tpu_custom_call.1} parent=0
    _
  %s6 = ssub.s32 1, %s4
  %s7 = scalar_select 0, %s6, %s4
  $region1: #{tpu_custom_call.1} parent=0
    #allocation2 [shape = 'u8[32768]{0}', space=vmem, size = 0x8000, scoped, tag = 'output window, operand 0']
    #allocation3 [shape = 's32[2]{0}', space=sflag, size = 0x8, scoped, tag = 'scoped memory for tpu_custom_call.1']
    %8 = vsyncpa [#allocation3], 0
    %s9 = scalar_lea.sflag [#allocation3], 1
    %10 = vsyncpa %s9, 0
    loop: start=0, step=1, limit=4
    $region2: #{tpu_custom_call.1} parent=1 // loop_pre_header
      _
    $region3: #{tpu_custom_call.1} parent=1 // loop_header
      %s12 = sphi 0, %s16
      %p13 = scmp.ge.s32.totalorder %s12, 4
      %s22 = sphi 0, %s24
      %s25 = sphi 0, %s22
      %s26 = sphi 0, %s25
      %s42 = sphi 0, %s26
      %s46 = sphi 0, %s46
      %s48 = sphi 0, %s46
      %s49 = sphi 0, %s48
      %s63 = sphi 0, %s49
      %s67 = sphi 0, %s67
      %s69 = sphi 0, %s67
      %s70 = sphi 0, %s69
      %s84 = sphi 0, %s70
      %s90 = sphi 0, %s92
      %s93 = sphi 0, %s90
      %s94 = sphi 0, %s93
      %s110 = sphi 0, %s94
    $region4: #{tpu_custom_call.1} parent=1 // loop_header_branch
      %15 = sbr.rel (%p13) target = $region8
    $region5: #{tpu_custom_call.1} parent=1 // loop_body
      %s17 = ssub.s32 %s12, 1
      %s18 = ssub.s32 %s12, 2
      %s19 = sadd.s32 %s12, 1
      %s20 = ssub.s32 %s12, %s19
      %p21 = scmp.eq.s32.totalorder %s20, 0
      %s23 = sadd.s32 %s22, 1
      %s24 = scalar_select %p21, %s22, %s23
      %p27 = pneg %p21
      %p28 = scmp.eq.s32.totalorder %s12, 1
      %p29 = por %p27, %p28
      %p30 = scmp.ne.s32.totalorder %s22, %s25
      %p31 = scmp.eq.s32.totalorder %s12, 0
      %p32 = por %p30, %p31
      %p33 = scmp.ne.s32.totalorder %s22, %s25
      %p34 = scmp.eq.s32.totalorder %s17, 1
      %p35 = por %p33, %p34
      %p36 = scmp.ne.s32.totalorder %s25, %s26
      %p37 = scmp.eq.s32.totalorder %s17, 0
      %p38 = por %p36, %p37
      %p39 = scmp.ne.s32.totalorder %s25, %s26
      %p40 = scmp.eq.s32.totalorder %s18, 1
      %p41 = por %p39, %p40
      %p43 = scmp.ne.s32.totalorder %s26, %s42
      %p44 = scmp.eq.s32.totalorder %s18, 0
      %p45 = por %p43, %p44
      %s47 = sadd.s32 %s46, 1
      %p50 = scmp.eq.s32.totalorder %s12, 1
      %p51 = scmp.ne.s32.totalorder %s46, %s48
      %p52 = scmp.eq.s32.totalorder %s12, 0
      %p53 = por %p51, %p52
      %p54 = scmp.ne.s32.totalorder %s46, %s48
      %p55 = scmp.eq.s32.totalorder %s17, 1
      %p56 = por %p54, %p55
      %p57 = scmp.ne.s32.totalorder %s48, %s49
      %p58 = scmp.eq.s32.totalorder %s17, 0
      %p59 = por %p57, %p58
      %p60 = scmp.ne.s32.totalorder %s48, %s49
      %p61 = scmp.eq.s32.totalorder %s18, 1
      %p62 = por %p60, %p61
      %p64 = scmp.ne.s32.totalorder %s49, %s63
      %p65 = scmp.eq.s32.totalorder %s18, 0
      %p66 = por %p64, %p65
      %s68 = sadd.s32 %s67, 1
      %p71 = scmp.eq.s32.totalorder %s12, 1
      %p72 = scmp.ne.s32.totalorder %s67, %s69
      %p73 = scmp.eq.s32.totalorder %s12, 0
      %p74 = por %p72, %p73
      %p75 = scmp.ne.s32.totalorder %s67, %s69
      %p76 = scmp.eq.s32.totalorder %s17, 1
      %p77 = por %p75, %p76
      %p78 = scmp.ne.s32.totalorder %s69, %s70
      %p79 = scmp.eq.s32.totalorder %s17, 0
      %p80 = por %p78, %p79
      %p81 = scmp.ne.s32.totalorder %s69, %s70
      %p82 = scmp.eq.s32.totalorder %s18, 1
      %p83 = por %p81, %p82
      %p85 = scmp.ne.s32.totalorder %s70, %s84
      %p86 = scmp.eq.s32.totalorder %s18, 0
      %p87 = por %p85, %p86
      %s88 = ssub.s32 %s12, %s19
      %p89 = scmp.eq.s32.totalorder %s88, 0
      %s91 = sadd.s32 %s90, 1
      %s92 = scalar_select %p89, %s90, %s91
      %p95 = pneg %p89
      %p96 = scmp.eq.s32.totalorder %s12, 1
      %p97 = por %p95, %p96
      %p98 = scmp.ne.s32.totalorder %s90, %s93
      %p99 = scmp.eq.s32.totalorder %s12, 0
      %p100 = por %p98, %p99
      %p101 = scmp.ne.s32.totalorder %s90, %s93
      %p102 = scmp.eq.s32.totalorder %s17, 1
      %p103 = por %p101, %p102
      %p104 = scmp.ne.s32.totalorder %s93, %s94
      %p105 = scmp.eq.s32.totalorder %s17, 0
      %p106 = por %p104, %p105
      %p107 = scmp.ne.s32.totalorder %s93, %s94
      %p108 = scmp.eq.s32.totalorder %s18, 1
      %p109 = por %p107, %p108
      %p111 = scmp.ne.s32.totalorder %s94, %s110
      %p112 = scmp.eq.s32.totalorder %s18, 0
      %p113 = por %p111, %p112
      %p114 = scmp.le.s32.totalorder 1, %s12
      %p115 = scmp.lt.s32.totalorder %s12, 3
      %p116 = pnand %p114, %p115
      %p117 = pneg %p116
      // Predicated region
      $region9: #{tpu_custom_call.1} parent=5 // pred_check
        _
      $region10: #{tpu_custom_call.1} parent=5 // pred_check_branch
        %119 = sbr.rel (%p116) target = $region12
      $region11: #{tpu_custom_call.1} parent=5 // pred_region
        %s120 = ssub.s32 %s12, 1
        // Predicated region
        $region13: #{tpu_custom_call.1} parent=11 // pred_check
          %p121 = pneg %p59
        $region14: #{tpu_custom_call.1} parent=11 // pred_check_branch
          %123 = sbr.rel (%p121) target = $region16
        $region15: #{tpu_custom_call.1} parent=11 // pred_region
          _
        $region16: #{tpu_custom_call.1} parent=11 // pred_fallthru
          _
        // Predicated region
        $region17: #{tpu_custom_call.1} parent=11 // pred_check
          %p124 = pneg %p80
        $region18: #{tpu_custom_call.1} parent=11 // pred_check_branch
          %126 = sbr.rel (%p124) target = $region20
        $region19: #{tpu_custom_call.1} parent=11 // pred_region
          _
        $region20: #{tpu_custom_call.1} parent=11 // pred_fallthru
          _
      $region12: #{tpu_custom_call.1} parent=5 // pred_fallthru
        _
      %p127 = scmp.lt.s32.totalorder %s12, 2
      // Predicated region
      $region21: #{tpu_custom_call.1} parent=5 // pred_check
        %p128 = pneg %p127
      $region22: #{tpu_custom_call.1} parent=5 // pred_check_branch
        %130 = sbr.rel (%p128) target = $region24
      $region23: #{tpu_custom_call.1} parent=5 // pred_region
        // Predicated region
        $region25: #{tpu_custom_call.1} parent=23 // pred_check
          %p131 = pneg %p32
        $region26: #{tpu_custom_call.1} parent=23 // pred_check_branch
          %133 = sbr.rel (%p131) target = $region28
        $region27: #{tpu_custom_call.1} parent=23 // pred_region
          %s134 = smul.u32 4, %s12
          %p135 = scmp.lt.s32.totalorder %s134, 7
          %s136 = scalar_select %p135, %s134, 7
          %s137 = smul.addr %s136, 8
          %s138 = scalar_lea.vmem %s0, %s137
          %s139 = smul.u32 4, %s12
        $region28: #{tpu_custom_call.1} parent=23 // pred_fallthru
          _
      $region24: #{tpu_custom_call.1} parent=5 // pred_fallthru
        _
      %p140 = scmp.le.s32.totalorder 1, %s12
      %p141 = scmp.lt.s32.totalorder %s12, 3
      %p142 = pnand %p140, %p141
      %p143 = pneg %p142
      // Predicated region
      $region29: #{tpu_custom_call.1} parent=5 // pred_check
        _
      $region30: #{tpu_custom_call.1} parent=5 // pred_check_branch
        %145 = sbr.rel (%p142) target = $region32
      $region31: #{tpu_custom_call.1} parent=5 // pred_region
        %s146 = ssub.s32 %s12, 1
        %s147 = smul.u32 4, %s17
        %p148 = scmp.lt.s32.totalorder %s147, 7
        %s149 = scalar_select %p148, %s147, 7
        %s150 = smul.addr %s149, 8
        %s151 = scalar_lea.vmem %s0, %s150
        %p152 = pneg %p38
        %p153 = pneg %p35
        %p154 = pneg %p59
        %p155 = pneg %p56
        %p156 = pneg %p80
        %p157 = pneg %p77
        %p158 = pneg %p106
        %p159 = pneg %p103
        %s160 = sand.u32 %s93, 1
        %s161 = scalar_lea.sflag [#allocation3], %s160
        %s162 = sand.u32 %s93, 1
        %s163 = smul.addr %s162, 32
        %s164 = scalar_lea.vmem [#allocation2], %s163
        %s165 = smul.u32 4, %s17
        %p166 = scmp.lt.s32.totalorder %s165, 7
        %s167 = scalar_select %p166, %s165, 7
        %s168 = smul.addr %s167, 8
        %s169 = scalar_lea.vmem %s0, %s168
        %s170 = smul.u32 4, %s17
        %s171 = smul.u32 4, %s17
        %v172 = vld [vmem:[%s169] sm:$0xff]
        %v173 = vld [vmem:[%s169 + $0x8] sm:$0xff]
        %v174 = vld [vmem:[%s169 + $0x10] sm:$0xff]
        %v175 = vld [vmem:[%s169 + $0x18] sm:$0xff]
        %v176 = vld [vmem:[%s1] sm:$0xff]
        %v177 = vld [vmem:[%s1 + $0x8] sm:$0xff]
        %v178 = vld [vmem:[%s1 + $0x10] sm:$0xff]
        %v179 = vld [vmem:[%s1 + $0x18] sm:$0xff]
        %v180 = vld [vmem:[%s1 + $0x20] sm:$0xff]
        %v181 = vld [vmem:[%s1 + $0x28] sm:$0xff]
        %v182 = vld [vmem:[%s1 + $0x30] sm:$0xff]
        %v183 = vld [vmem:[%s1 + $0x38] sm:$0xff]
        %v184 = vld [vmem:[%s1 + $0x40] sm:$0xff]
        %v185 = vld [vmem:[%s1 + $0x48] sm:$0xff]
        %v186 = vld [vmem:[%s1 + $0x50] sm:$0xff]
        %v187 = vld [vmem:[%s1 + $0x58] sm:$0xff]
        %v188 = vld [vmem:[%s1 + $0x60] sm:$0xff]
        %v189 = vld [vmem:[%s1 + $0x68] sm:$0xff]
        %v190 = vld [vmem:[%s1 + $0x70] sm:$0xff]
        %v191 = vld [vmem:[%s1 + $0x78] sm:$0xff]
        %v192 = vld [vmem:[%s2] sm:$0x1]
        %v194 = vperm.slane %v192, 0
        %vm196 = vcmask 261120
        %v198 = vsel %vm196, %v172, 0
        %v201 = vsel %vm196, %v173, 0
        %v204 = vsel %vm196, %v174, 0
        %v207 = vsel %vm196, %v175, 0
        %v210 = vsel %vm196, %v176, 0
        %v213 = vsel %vm196, %v177, 0
        %v216 = vsel %vm196, %v178, 0
        %v219 = vsel %vm196, %v179, 0
        %v222 = vsel %vm196, %v180, 0
        %v225 = vsel %vm196, %v181, 0
        %v228 = vsel %vm196, %v182, 0
        %v231 = vsel %vm196, %v183, 0
        %v234 = vsel %vm196, %v184, 0
        %v237 = vsel %vm196, %v185, 0
        %v240 = vsel %vm196, %v186, 0
        %v243 = vsel %vm196, %v187, 0
        %v246 = vsel %vm196, %v188, 0
        %v249 = vsel %vm196, %v189, 0
        %v252 = vsel %vm196, %v190, 0
        %v255 = vsel %vm196, %v191, 0
        %257 = vmatpush.xpose.msra.mxu0 %v255
        %258 = vmatpush.xpose.msra.mxu0 %v252
        %259 = vmatpush.xpose.msra.mxu0 %v249
        %260 = vmatpush.xpose.msra.mxu0 %v246
        %261 = vmatpush.xpose.msra.mxu0 %v243
        %262 = vmatpush.xpose.msra.mxu0 %v240
        %263 = vmatpush.xpose.msra.mxu0 %v237
        %264 = vmatpush.xpose.msra.mxu0 %v234
        %265 = vmatpush.xpose.msra.mxu0 %v231
        %266 = vmatpush.xpose.msra.mxu0 %v228
        %267 = vmatpush.xpose.msra.mxu0 %v225
        %268 = vmatpush.xpose.msra.mxu0 %v222
        %269 = vmatpush.xpose.msra.mxu0 %v219
        %270 = vmatpush.xpose.msra.mxu0 %v216
        %271 = vmatpush.xpose.msra.mxu0 %v213
        %272 = vmatpush.xpose.msra.mxu0 %v210
        %273 = vmatmul.f32.gmra.mxu0 %v198
        %v274 = vpop.f32.mrf.mxu0
        %v275 = vadd.f32 %v194, %v274
        %276 = vmatmul.f32.gmra.mxu0 %v201
        %v277 = vpop.f32.mrf.mxu0
        %v278 = vadd.f32 %v194, %v277
        %279 = vmatmul.f32.gmra.mxu0 %v204
        %v280 = vpop.f32.mrf.mxu0
        %v281 = vadd.f32 %v194, %v280
        %282 = vmatmul.f32.gmra.mxu0 %v207
        %v283 = vpop.f32.mrf.mxu0
        %v284 = vadd.f32 %v194, %v283
        %285 = vdwg.mxu0
        %286 = vmax.xlane.f32.xlu0 %v275
        %v287 = vpop.xlane.xlu0 %286
        %288 = vmax.xlane.f32.xlu0 %v278
        %v289 = vpop.xlane.xlu0 %288
        %290 = vmax.xlane.f32.xlu0 %v281
        %v291 = vpop.xlane.xlu0 %290
        %292 = vmax.xlane.f32.xlu0 %v284
        %v293 = vpop.xlane.xlu0 %292
        %v294 = vsub.f32 %v275, %v287
        %v295 = vsub.f32 %v278, %v289
        %v296 = vsub.f32 %v281, %v291
        %v297 = vsub.f32 %v284, %v293
        %v298 = vmul.f32 %v294, 1.442695
        %v299 = vpow.pop %v298
        %v300 = vmul.f32 %v295, 1.442695
        %v301 = vpow.pop %v300
        %v302 = vmul.f32 %v296, 1.442695
        %v303 = vpow.pop %v302
        %v304 = vmul.f32 %v297, 1.442695
        %v305 = vpow.pop %v304
        %306 = vadd.xlane.f32.xlu0 %v299
        %v307 = vpop.xlane.xlu0 %306
        %308 = vadd.xlane.f32.xlu0 %v301
        %v309 = vpop.xlane.xlu0 %308
        %310 = vadd.xlane.f32.xlu0 %v303
        %v311 = vpop.xlane.xlu0 %310
        %312 = vadd.xlane.f32.xlu0 %v305
        %v313 = vpop.xlane.xlu0 %312
        %v314 = vlog2.pop %v307
        %v315 = vmul.f32 %v314, 0.6931472
        %v316 = vlog2.pop %v309
        %v317 = vmul.f32 %v316, 0.6931472
        %v318 = vlog2.pop %v311
        %v319 = vmul.f32 %v318, 0.6931472
        %v320 = vlog2.pop %v313
        %v321 = vmul.f32 %v320, 0.6931472
        %v322 = vsub.f32 %v294, %v315
        %v323 = vsub.f32 %v295, %v317
        %v324 = vsub.f32 %v296, %v319
        %v325 = vsub.f32 %v297, %v321
        %326 = vst [vmem:[%s164] sm:$0xff] %v322
        %327 = vst [vmem:[%s164 + $0x8] sm:$0xff] %v323
        %328 = vst [vmem:[%s164 + $0x10] sm:$0xff] %v324
        %329 = vst [vmem:[%s164 + $0x18] sm:$0xff] %v325
        %s330 = sand.u32 %s93, 1
        %s331 = scalar_lea.sflag [#allocation3], %s330
        %s332 = sand.u32 %s93, 1
        %s333 = smul.addr %s332, 32
        %s334 = scalar_lea.vmem [#allocation2], %s333
        // Predicated region
        $region33: #{tpu_custom_call.1} parent=31 // pred_check
          %p335 = pneg %p103
        $region34: #{tpu_custom_call.1} parent=31 // pred_check_branch
          %337 = sbr.rel (%p335) target = $region36
        $region35: #{tpu_custom_call.1} parent=31 // pred_region
          %s338 = smul.u32 4, %s17
          %340 = vsyncadd %s331, 0
          %s341 = smul.addr %s338, 8
          %s342 = scalar_lea.hbm %s3, %s341
          %s343 = sshll.u32 %s334, 4
          %s344 = int_to_ptr.vmem [resolvable:$true] %s343
          %s345 = sshll.u32 %s342, 4
          %s346 = int_to_ptr.hbm [resolvable:$true] %s345
          %351 = dma.vmem_to_hbm [thread:$0]  %s344, 512, %s346, %s331, 128, 128, 8
        $region36: #{tpu_custom_call.1} parent=31 // pred_fallthru
          _
      $region32: #{tpu_custom_call.1} parent=5 // pred_fallthru
        _
      %p352 = scmp.le.s32.totalorder 2, %s12
      // Predicated region
      $region37: #{tpu_custom_call.1} parent=5 // pred_check
        %p353 = pneg %p352
      $region38: #{tpu_custom_call.1} parent=5 // pred_check_branch
        %355 = sbr.rel (%p353) target = $region40
      $region39: #{tpu_custom_call.1} parent=5 // pred_region
        %s356 = ssub.s32 %s12, 2
        // Predicated region
        $region41: #{tpu_custom_call.1} parent=39 // pred_check
          %p357 = pneg %p109
        $region42: #{tpu_custom_call.1} parent=39 // pred_check_branch
          %359 = sbr.rel (%p357) target = $region44
        $region43: #{tpu_custom_call.1} parent=39 // pred_region
          %s360 = sand.u32 %s94, 1
          %s361 = scalar_lea.sflag [#allocation3], %s360
          %s362 = sand.u32 %s94, 1
          %s363 = smul.addr %s362, 32
          %s364 = scalar_lea.vmem [#allocation2], %s363
          %366 = dma.done %s361, 512
        $region44: #{tpu_custom_call.1} parent=39 // pred_fallthru
          _
      $region40: #{tpu_custom_call.1} parent=5 // pred_fallthru
        _
    $region6: #{tpu_custom_call.1} parent=1 // loop_footer
      %s16 = sadd.s32 1, %s12
    $region7: #{tpu_custom_call.1} parent=1 // loop_footer_branch
      %11 = sbr.rel target = $region3
    $region8: #{tpu_custom_call.1} parent=1 // loop_exit
      _
    %367 = vsyncpa [#allocation3], 1
    %s368 = scalar_lea.sflag [#allocation3], 1
    %369 = vsyncpa %s368, 1

</llo_original>
